<compile_context>
chip_gen: v6e
topology: v6e:2x2x1
jax: 0.10.0
libtpu: 0.0.40
codegen_flags: <defaults>
</compile_context>

<pallas_src>
import math
import functools

import jax
import jax.numpy as jnp
from jax.experimental import pallas as pl
from jax.experimental.pallas import tpu as pltpu


def _round_up(x, mult):
    return (x + mult - 1) // mult * mult


def _arcloss_kernel(logits_ref, label_ref, loss_ref, l_ref, t_ref, *,
                    s, cos_m, sin_m, th, mm, num_classes, block_c, c_aligned):
    k = pl.program_id(1)
    n_k = pl.num_programs(1)

    @pl.when(k == 0)
    def _init():
        l_ref[...] = jnp.zeros_like(l_ref)
        t_ref[...] = jnp.zeros_like(t_ref)

    # Upcast right after the load so bf16 inputs also work.
    cosine = logits_ref[...].astype(jnp.float32)           # (TB, TC)

    # Label index relative to this class tile: one (TB,1) subtract instead of
    # adding k*block_c to every element of the iota.
    label_local = label_ref[...] - k * block_c              # (TB, 1) int32
    local_col = jax.lax.broadcasted_iota(jnp.int32, cosine.shape, 1)
    is_target = local_col == label_local                    # (TB, TC)

    # Static shift of s: exp(s*cos - s) in (0, 1] for true cosines.
    p = jnp.exp(cosine * s - s)                              # (TB, TC)
    if not c_aligned:
        # Boundary class tile: zero the columns past num_classes (the partial
        # DMA leaves garbage there; exp may be inf/NaN but where() discards it).
        valid = local_col < (num_classes - k * block_c)
        p = jnp.where(valid, p, 0.0)

    # Running sum of non-target exponentials and running target cosine.
    l_ref[...] += jnp.sum(jnp.where(is_target, 0.0, p), axis=-1, keepdims=True)
    t_ref[...] += jnp.sum(jnp.where(is_target, cosine, 0.0), axis=-1, keepdims=True)

    @pl.when(k == n_k - 1)
    def _finalize():
        # ArcFace margin math on a single (TB, 1) vector per batch tile.
        cos_t = t_ref[...]
        sin_t = jnp.sqrt(jnp.maximum(1.0 - cos_t * cos_t, 0.0))
        phi = cos_t * cos_m - sin_t * sin_m
        phi = jnp.where(cos_t > th, phi, cos_t - mm)
        denom = l_ref[...] + jnp.exp(phi * s - s)
        # loss = logsumexp(s * blended) - s*phi, with static shift s.
        loss_ref[...] = s + jnp.log(denom) - s * phi


def arc_loss(logits, label, s=30.0, m=0.5, *, block_b=256, block_c=8192,
             vmem_limit_bytes=40 * 1024 * 1024):
    """ArcFace-margin cross-entropy.

    logits: (B, C) cosine similarities in [-1, 1] (float32 or bfloat16; pass
            bf16 to halve HBM traffic -- the kernel upcasts internally).
    label:  (B,) integer class ids in [0, C).
    """
    B, C = logits.shape

    # Batch tile: multiple of 8, sized so the "parallel" batch axis has >= 2
    # grid tiles when possible (megacore sharding on 2-TensorCore chips).
    tb = max(8, min(block_b, _round_up(-(-B // 2), 8)))
    # Class tile: multiple of 128; the reduction (class) axis is streamed last.
    tc = min(block_c, _round_up(C, 128))
    grid = (pl.cdiv(B, tb), pl.cdiv(C, tc))
    c_aligned = (C % tc) == 0   # static: skip the column mask on aligned C

    label2d = label.astype(jnp.int32).reshape(B, 1)

    kernel = functools.partial(
        _arcloss_kernel,
        s=float(s),
        cos_m=math.cos(m),
        sin_m=math.sin(m),
        th=math.cos(math.pi - m),
        mm=math.sin(math.pi - m) * m,
        num_classes=C,
        block_c=tc,
        c_aligned=c_aligned,
    )

    per_row = pl.pallas_call(
        kernel,
        out_shape=jax.ShapeDtypeStruct((B, 1), jnp.float32),
        grid=grid,
        in_specs=[
            # Logits stream tile-by-tile over (batch, class); ragged edges are
            # handled as boundary blocks (no HBM-side padding copy).
            pl.BlockSpec((tb, tc), lambda i, k: (i, k)),
            # Labels: one block per batch tile, pinned across all class tiles.
            pl.BlockSpec((tb, 1), lambda i, k: (i, 0)),
        ],
        # Per-row losses; output block index constant along the class axis.
        out_specs=pl.BlockSpec((tb, 1), lambda i, k: (i, 0)),
        scratch_shapes=[
            pltpu.VMEM((tb, 1), jnp.float32),   # running non-target sum-exp
            pltpu.VMEM((tb, 1), jnp.float32),   # running target cosine
        ],
        compiler_params=pltpu.CompilerParams(
            dimension_semantics=("parallel", "arbitrary"),
            vmem_limit_bytes=vmem_limit_bytes,
        ),
    )(logits, label2d)

    # Mean over the true batch (matches nn.CrossEntropyLoss default reduction).
    return jnp.sum(per_row[:, 0]) / B


def _arc_loss_ref(logits, label, s=30.0, m=0.5):
    # Pure-JAX reference (mirrors the PyTorch module) for sanity checking.
    cosine = logits.astype(jnp.float32)
    sine = jnp.sqrt(jnp.maximum(1.0 - cosine ** 2, 0.0))
    cos_m, sin_m = math.cos(m), math.sin(m)
    th, mm = math.cos(math.pi - m), math.sin(math.pi - m) * m
    phi = cosine * cos_m - sine * sin_m
    phi = jnp.where(cosine > th, phi, cosine - mm)
    one_hot = jax.nn.one_hot(label, cosine.shape[1], dtype=jnp.float32)
    output = (one_hot * phi + (1.0 - one_hot) * cosine) * s
    logz = jax.nn.logsumexp(output, axis=-1)
    tgt = jnp.take_along_axis(output, label[:, None].astype(jnp.int32), axis=-1)[:, 0]
    return jnp.mean(logz - tgt)


if __name__ == "__main__":
    key = jax.random.PRNGKey(0)
    k1, k2, k3, k4, k5, k6 = jax.random.split(key, 6)

    # Case 1: small shape, single (ragged) class tile -> exercises the column mask.
    B, C = 8, 32
    logits = jnp.tanh(jax.random.normal(k1, (B, C), dtype=jnp.float32))
    label = jax.random.randint(k2, (B,), 0, C, dtype=jnp.int32)
    loss = arc_loss(logits, label)
    jax.block_until_ready(loss)
    ref = _arc_loss_ref(logits, label)
    assert jnp.allclose(loss, ref, rtol=1e-5, atol=1e-4), (loss, ref)

    # Case 2: ragged batch + ragged classes over multiple tiles -> boundary
    # blocks on both axes, accumulation across class tiles, no HBM padding.
    B2, C2 = 12, 200
    logits2 = jnp.tanh(jax.random.normal(k3, (B2, C2), dtype=jnp.float32))
    label2 = jax.random.randint(k4, (B2,), 0, C2, dtype=jnp.int32)
    loss2 = arc_loss(logits2, label2, block_b=8, block_c=128)
    jax.block_until_ready(loss2)
    ref2 = _arc_loss_ref(logits2, label2)
    assert jnp.allclose(loss2, ref2, rtol=1e-5, atol=1e-4), (loss2, ref2)

    # Case 3: aligned C fast path (no column mask), multiple class tiles,
    # bfloat16 logits upcast inside the kernel.
    B3, C3 = 16, 256
    logits3 = jnp.tanh(jax.random.normal(k5, (B3, C3), dtype=jnp.float32)).astype(jnp.bfloat16)
    label3 = jax.random.randint(k6, (B3,), 0, C3, dtype=jnp.int32)
    loss3 = arc_loss(logits3, label3, block_b=256, block_c=128)
    jax.block_until_ready(loss3)
    ref3 = _arc_loss_ref(logits3, label3)
    assert jnp.allclose(loss3, ref3, rtol=1e-5, atol=1e-4), (loss3, ref3)

    print("KERNEL_OK")
</pallas_src>

<mosaic_0001>
module attributes {stable_mosaic.version = 11 : i64} {
  func.func @_arcloss_kernel(%arg0: i32, %arg1: i32, %arg2: memref<8x128xf32, #tpu.memory_space<vmem>>, %arg3: memref<8x1xi32, #tpu.memory_space<vmem>>, %arg4: memref<8x1xf32, #tpu.memory_space<vmem>>, %arg5: memref<8x1xf32, #tpu.memory_space<vmem>>, %arg6: memref<8x1xf32, #tpu.memory_space<vmem>>) attributes {dimension_semantics = [#tpu.dimension_semantics<parallel>, #tpu.dimension_semantics<arbitrary>], iteration_bounds = array<i64: 1, 1>, scalar_prefetch = 0 : i64, scratch_operands = 2 : i64, tpu.core_type = #tpu.core_type<tc>, window_params = [{transform_indices = @transform_0, window_bounds = array<i64: 8, 128>}, {transform_indices = @transform_1, window_bounds = array<i64: 8, 1>}, {transform_indices = @transform_2, window_bounds = array<i64: 8, 1>}]} {
    %c0_i32 = arith.constant 0 : i32
    %0 = arith.cmpi eq, %arg1, %c0_i32 : i32
    %1 = arith.extui %0 : i1 to i32
    %c0_i32_0 = arith.constant 0 : i32
    %2 = arith.cmpi ne, %1, %c0_i32_0 : i32
    scf.if %2 {
      %cst_21 = arith.constant 0.000000e+00 : f32
      %39 = vector.broadcast %cst_21 : f32 to vector<8x1xf32>
      %c0_22 = arith.constant 0 : index
      %c0_23 = arith.constant 0 : index
      %40 = vector.load %arg5[%c0_22, %c0_23] : memref<8x1xf32, #tpu.memory_space<vmem>>, vector<8x1xf32>
      tpu.vector_store %arg5[%c0_22, %c0_23], %39 {strides = array<i32>} : memref<8x1xf32, #tpu.memory_space<vmem>>, vector<8x1xf32>,
      %cst_24 = arith.constant 0.000000e+00 : f32
      %41 = vector.broadcast %cst_24 : f32 to vector<8x1xf32>
      %c0_25 = arith.constant 0 : index
      %c0_26 = arith.constant 0 : index
      %42 = vector.load %arg6[%c0_25, %c0_26] : memref<8x1xf32, #tpu.memory_space<vmem>>, vector<8x1xf32>
      tpu.vector_store %arg6[%c0_25, %c0_26], %41 {strides = array<i32>} : memref<8x1xf32, #tpu.memory_space<vmem>>, vector<8x1xf32>,
    } else {
    }
    %c0 = arith.constant 0 : index
    %c0_1 = arith.constant 0 : index
    %3 = vector.load %arg2[%c0, %c0_1] : memref<8x128xf32, #tpu.memory_space<vmem>>, vector<8x128xf32>
    %c0_2 = arith.constant 0 : index
    %c0_3 = arith.constant 0 : index
    %4 = vector.load %arg3[%c0_2, %c0_3] : memref<8x1xi32, #tpu.memory_space<vmem>>, vector<8x1xi32>
    %c128_i32 = arith.constant 128 : i32
    %5 = arith.muli %arg1, %c128_i32 : i32
    %6 = vector.broadcast %5 : i32 to vector<8x1xi32>
    %7 = arith.subi %4, %6 : vector<8x1xi32>
    %8 = tpu.iota {dimensions = array<i32: 1>} : vector<8x128xi32>
    %9 = vector.broadcast %7 : vector<8x1xi32> to vector<8x128xi32>
    %10 = arith.cmpi eq, %8, %9 : vector<8x128xi32>
    %cst = arith.constant 3.000000e+01 : f32
    %11 = vector.broadcast %cst : f32 to vector<8x128xf32>
    %12 = arith.mulf %3, %11 : vector<8x128xf32>
    %cst_4 = arith.constant 3.000000e+01 : f32
    %13 = vector.broadcast %cst_4 : f32 to vector<8x128xf32>
    %14 = arith.subf %12, %13 : vector<8x128xf32>
    %15 = math.exp %14 : vector<8x128xf32>
    %c128_i32_5 = arith.constant 128 : i32
    %16 = arith.muli %arg1, %c128_i32_5 : i32
    %c32_i32 = arith.constant 32 : i32
    %17 = arith.subi %c32_i32, %16 : i32
    %18 = vector.broadcast %17 : i32 to vector<8x128xi32>
    %19 = arith.cmpi slt, %8, %18 : vector<8x128xi32>
    %cst_6 = arith.constant 0.000000e+00 : f32
    %20 = vector.broadcast %cst_6 : f32 to vector<8x128xf32>
    %21 = arith.select %19, %15, %20 : vector<8x128xi1>, vector<8x128xf32>
    %c0_7 = arith.constant 0 : index
    %c0_8 = arith.constant 0 : index
    %22 = vector.load %arg5[%c0_7, %c0_8] : memref<8x1xf32, #tpu.memory_space<vmem>>, vector<8x1xf32>
    %cst_9 = arith.constant 0.000000e+00 : f32
    %23 = vector.broadcast %cst_9 : f32 to vector<8x128xf32>
    %24 = arith.select %10, %23, %21 : vector<8x128xi1>, vector<8x128xf32>
    %cst_10 = arith.constant dense<0.000000e+00> : vector<8xf32>
    %25 = vector.multi_reduction <add>, %24, %cst_10 [1] : vector<8x128xf32> to vector<8xf32>
    %26 = vector.shape_cast %25 : vector<8xf32> to vector<8x1xf32>
    %27 = arith.addf %22, %26 : vector<8x1xf32>
    %c0_11 = arith.constant 0 : index
    %c0_12 = arith.constant 0 : index
    %28 = vector.load %arg5[%c0_11, %c0_12] : memref<8x1xf32, #tpu.memory_space<vmem>>, vector<8x1xf32>
    tpu.vector_store %arg5[%c0_11, %c0_12], %27 {strides = array<i32>} : memref<8x1xf32, #tpu.memory_space<vmem>>, vector<8x1xf32>,
    %c0_13 = arith.constant 0 : index
    %c0_14 = arith.constant 0 : index
    %29 = vector.load %arg6[%c0_13, %c0_14] : memref<8x1xf32, #tpu.memory_space<vmem>>, vector<8x1xf32>
    %cst_15 = arith.constant 0.000000e+00 : f32
    %30 = vector.broadcast %cst_15 : f32 to vector<8x128xf32>
    %31 = arith.select %10, %3, %30 : vector<8x128xi1>, vector<8x128xf32>
    %cst_16 = arith.constant dense<0.000000e+00> : vector<8xf32>
    %32 = vector.multi_reduction <add>, %31, %cst_16 [1] : vector<8x128xf32> to vector<8xf32>
    %33 = vector.shape_cast %32 : vector<8xf32> to vector<8x1xf32>
    %34 = arith.addf %29, %33 : vector<8x1xf32>
    %c0_17 = arith.constant 0 : index
    %c0_18 = arith.constant 0 : index
    %35 = vector.load %arg6[%c0_17, %c0_18] : memref<8x1xf32, #tpu.memory_space<vmem>>, vector<8x1xf32>
    tpu.vector_store %arg6[%c0_17, %c0_18], %34 {strides = array<i32>} : memref<8x1xf32, #tpu.memory_space<vmem>>, vector<8x1xf32>,
    %c0_i32_19 = arith.constant 0 : i32
    %36 = arith.cmpi eq, %arg1, %c0_i32_19 : i32
    %37 = arith.extui %36 : i1 to i32
    %c0_i32_20 = arith.constant 0 : i32
    %38 = arith.cmpi ne, %37, %c0_i32_20 : i32
    scf.if %38 {
      %c0_21 = arith.constant 0 : index
      %c0_22 = arith.constant 0 : index
      %39 = vector.load %arg6[%c0_21, %c0_22] : memref<8x1xf32, #tpu.memory_space<vmem>>, vector<8x1xf32>
      %40 = arith.mulf %39, %39 : vector<8x1xf32>
      %cst_23 = arith.constant 1.000000e+00 : f32
      %41 = vector.broadcast %cst_23 : f32 to vector<8x1xf32>
      %42 = arith.subf %41, %40 : vector<8x1xf32>
      %cst_24 = arith.constant 0.000000e+00 : f32
      %43 = vector.broadcast %cst_24 : f32 to vector<8x1xf32>
      %44 = arith.maximumf %42, %43 : vector<8x1xf32>
      %45 = math.sqrt %44 : vector<8x1xf32>
      %cst_25 = arith.constant 0.87758255 : f32
      %46 = vector.broadcast %cst_25 : f32 to vector<8x1xf32>
      %47 = arith.mulf %39, %46 : vector<8x1xf32>
      %cst_26 = arith.constant 0.47942555 : f32
      %48 = vector.broadcast %cst_26 : f32 to vector<8x1xf32>
      %49 = arith.mulf %45, %48 : vector<8x1xf32>
      %50 = arith.subf %47, %49 : vector<8x1xf32>
      %cst_27 = arith.constant -0.87758255 : f32
      %51 = vector.broadcast %cst_27 : f32 to vector<8x1xf32>
      %52 = arith.cmpf ogt, %39, %51 : vector<8x1xf32>
      %cst_28 = arith.constant 0.239712775 : f32
      %53 = vector.broadcast %cst_28 : f32 to vector<8x1xf32>
      %54 = arith.subf %39, %53 : vector<8x1xf32>
      %55 = arith.select %52, %50, %54 : vector<8x1xi1>, vector<8x1xf32>
      %c0_29 = arith.constant 0 : index
      %c0_30 = arith.constant 0 : index
      %56 = vector.load %arg5[%c0_29, %c0_30] : memref<8x1xf32, #tpu.memory_space<vmem>>, vector<8x1xf32>
      %cst_31 = arith.constant 3.000000e+01 : f32
      %57 = vector.broadcast %cst_31 : f32 to vector<8x1xf32>
      %58 = arith.mulf %55, %57 : vector<8x1xf32>
      %cst_32 = arith.constant 3.000000e+01 : f32
      %59 = vector.broadcast %cst_32 : f32 to vector<8x1xf32>
      %60 = arith.subf %58, %59 : vector<8x1xf32>
      %61 = math.exp %60 : vector<8x1xf32>
      %62 = arith.addf %56, %61 : vector<8x1xf32>
      %63 = math.log %62 : vector<8x1xf32>
      %cst_33 = arith.constant 3.000000e+01 : f32
      %64 = vector.broadcast %cst_33 : f32 to vector<8x1xf32>
      %65 = arith.addf %64, %63 : vector<8x1xf32>
      %cst_34 = arith.constant 3.000000e+01 : f32
      %66 = vector.broadcast %cst_34 : f32 to vector<8x1xf32>
      %67 = arith.mulf %66, %55 : vector<8x1xf32>
      %68 = arith.subf %65, %67 : vector<8x1xf32>
      %c0_35 = arith.constant 0 : index
      %c0_36 = arith.constant 0 : index
      %69 = vector.load %arg4[%c0_35, %c0_36] : memref<8x1xf32, #tpu.memory_space<vmem>>, vector<8x1xf32>
      tpu.vector_store %arg4[%c0_35, %c0_36], %68 {strides = array<i32>} : memref<8x1xf32, #tpu.memory_space<vmem>>, vector<8x1xf32>,
    } else {
    }
    return
  }
  func.func @transform_0(%arg0: i32, %arg1: i32) -> (i32, i32) {
    %c0_i32 = arith.constant 0 : i32
    return %arg0, %arg1 : i32, i32
  }
  func.func @transform_1(%arg0: i32, %arg1: i32) -> (i32, i32) {
    %c0_i32 = arith.constant 0 : i32
    %c0_i32_0 = arith.constant 0 : i32
    return %arg0, %c0_i32 : i32, i32
  }
  func.func @transform_2(%arg0: i32, %arg1: i32) -> (i32, i32) {
    %c0_i32 = arith.constant 0 : i32
    %c0_i32_0 = arith.constant 0 : i32
    return %arg0, %c0_i32 : i32, i32
  }
}

</mosaic_0001>

<llo_original>
// kernel: tpu_custom_call.1
$region0: #{tpu_custom_call.1}
  #allocation0 [shape = 'u32[]', space=smem, size = 0x4, offset = 0x4, fixed_abs, tag = 'smem constant byte address 0x4 - core index']
  #allocation1 [shape = 'u32[144,128]{1,0:T(1,128)}', space=vmem, size = 0x12000, scoped, tag = 'internal scratch']
  #allocation2 [shape = 'f32[8,1]{1,0:T(8,128)}', space=vmem, size = 0x1000, scoped, tag = 'scratch operand']
  #allocation3 [shape = 'f32[8,1]{1,0:T(8,128)}', space=vmem, size = 0x1000, scoped, tag = 'scratch operand']
  %s0 = inlined_call_operand.vmem [shape: f32[8,32], index: 0, kind: input, shape index: {}]
  %s1 = inlined_call_operand.vmem [shape: s32[8,1], index: 1, kind: input, shape index: {}]
  %s2 = inlined_call_operand.vmem [shape: f32[8,1], index: 2, kind: output, shape index: {}]
  %s3 = sld [smem:[#allocation0]]
  $region26: #{tpu_custom_call.1} parent=0
    _
  %s5 = ssub.s32 1, %s3
  %s6 = scalar_select 0, %s5, %s3
  // Predicated region
  $region2: #{tpu_custom_call.1} parent=0 // pred_check
    _
  $region3: #{tpu_custom_call.1} parent=0 // pred_check_branch
    %8 = sbr.rel (0) target = $region5
  $region4: #{tpu_custom_call.1} parent=0 // pred_region
    _
  $region5: #{tpu_custom_call.1} parent=0 // pred_fallthru
    _
  // Predicated region
  $region6: #{tpu_custom_call.1} parent=0 // pred_check
    _
  $region7: #{tpu_custom_call.1} parent=0 // pred_check_branch
    %10 = sbr.rel (0) target = $region9
  $region8: #{tpu_custom_call.1} parent=0 // pred_region
    _
  $region9: #{tpu_custom_call.1} parent=0 // pred_fallthru
    _
  %p11 = scmp.eq.s32.totalorder 0, 0
  // Predicated region
  $region10: #{tpu_custom_call.1} parent=0 // pred_check
    %p12 = pneg %p11
  $region11: #{tpu_custom_call.1} parent=0 // pred_check_branch
    %14 = sbr.rel (%p12) target = $region13
  $region12: #{tpu_custom_call.1} parent=0 // pred_region
    %vm15 = vcmask 7168
    %16 = vst.msk [vmem:[#allocation2] sm:$0xff] %vm15, 0.0
    %17 = vst.msk [vmem:[#allocation3] sm:$0xff] %vm15, 0.0
  $region13: #{tpu_custom_call.1} parent=0 // pred_fallthru
    _
  %v18 = vld [vmem:[%s0] sm:$0xff]
  %v19 = vld [vmem:[%s1] sm:$0xff]
  %s20 = smul.u32 0, 128
  %v21 = vstv %s20
  %v22 = vsub.s32 %v19, %v21
  %v23 = vlaneseq
  %v24 = vand.u32 %v23, 127
  %25 = vset.pattern.permute.xlu0 0
  %26 = vperm.xlu0 %25, %v22
  %v27 = vpop.permute.xlu0 %26
  %vm28 = vcmp.eq.s32.totalorder %v24, %v27
  %v29 = vmul.f32 %v18, 30.0
  %v30 = vsub.f32 %v29, 30.0
  %v31 = vmul.f32 %v30, 1.442695
  %v32 = vpow.pop %v31
  %s33 = ssub.s32 32, %s20
  %v34 = vstv %s33
  %vm35 = vcmp.lt.s32.totalorder %v24, %v34
  %v36 = vsel %vm35, %v32, 0.0
  %v37 = vld [vmem:[#allocation2] sm:$0xff]
  %v38 = vsel %vm28, 0.0, %v36
  %39 = vadd.xlane.f32.xlu0 %v38
  %v40 = vpop.xlane.xlu0 %39
  %v41 = vadd.f32 %v37, %v40
  %vm42 = vcmask 7168
  %43 = vst.msk [vmem:[#allocation2] sm:$0xff] %vm42, %v41
  %v44 = vld [vmem:[#allocation3] sm:$0xff]
  %v45 = vsel %vm28, %v18, 0.0
  %46 = vadd.xlane.f32.xlu0 %v45
  %v47 = vpop.xlane.xlu0 %46
  %v48 = vadd.f32 %v44, %v47
  %49 = vst.msk [vmem:[#allocation3] sm:$0xff] %vm42, %v48
  // Predicated region
  $region14: #{tpu_custom_call.1} parent=0 // pred_check
    %p50 = pneg %p11
  $region15: #{tpu_custom_call.1} parent=0 // pred_check_branch
    %52 = sbr.rel (%p50) target = $region17
  $region16: #{tpu_custom_call.1} parent=0 // pred_region
    %v53 = vld [vmem:[#allocation3] sm:$0xff]
    %v54 = vmul.f32 %v53, %v53
    %v55 = vsub.f32 1.0, %v54
    %v56 = vmax.f32 %v55, 0.0
    %v57 = vrsqrt.pop %v56
    %v58 = vmul.f32 %v56, %v57
    %vm59 = vcmp.eq.f32.partialorder %v56, inf
    %v60 = vsel %vm59, %v56, %v58
    %vm61 = vcmp.eq.f32.partialorder %v56, 0.0
    %v62 = vand.u32 %v56, 2147483648
    %v63 = vsel %vm61, %v62, %v60
    %v64 = vmul.f32 %v53, 0.87758255
    %v65 = vmul.f32 %v63, 0.47942555
    %v66 = vsub.f32 %v64, %v65
    %vm67 = vcmp.gt.f32.partialorder %v53, -0.87758255
    %v68 = vsub.f32 %v53, 0.23971277
    %v69 = vsel %vm67, %v66, %v68
    %v70 = vld [vmem:[#allocation2] sm:$0xff]
    %v71 = vmul.f32 %v69, 30.0
    %v72 = vsub.f32 %v71, 30.0
    %v73 = vmul.f32 %v72, 1.442695
    %v74 = vpow.pop %v73
    %v75 = vadd.f32 %v70, %v74
    %v76 = vlog2.pop %v75
    %v77 = vmul.f32 %v76, 0.6931472
    %v78 = vadd.f32 %v77, 30.0
    %v79 = vsub.f32 %v78, %v71
    %80 = vst.msk [vmem:[%s2] sm:$0xff] %vm42, %v79
  $region17: #{tpu_custom_call.1} parent=0 // pred_fallthru
    _
  // Predicated region
  $region18: #{tpu_custom_call.1} parent=0 // pred_check
    _
  $region19: #{tpu_custom_call.1} parent=0 // pred_check_branch
    %82 = sbr.rel (0) target = $region21
  $region20: #{tpu_custom_call.1} parent=0 // pred_region
    _
  $region21: #{tpu_custom_call.1} parent=0 // pred_fallthru
    _
  // Predicated region
  $region22: #{tpu_custom_call.1} parent=0 // pred_check
    _
  $region23: #{tpu_custom_call.1} parent=0 // pred_check_branch
    %84 = sbr.rel (0) target = $region25
  $region24: #{tpu_custom_call.1} parent=0 // pred_region
    _
  $region25: #{tpu_custom_call.1} parent=0 // pred_fallthru
    _

</llo_original>
